<compile_context>
chip_gen: v6e
topology: v6e:2x2x1
jax: 0.10.0
libtpu: 0.0.40
codegen_flags: <defaults>
</compile_context>

<pallas_src>
import jax
import jax.numpy as jnp
from jax.experimental import pallas as pl
from jax.experimental.pallas import tpu as pltpu


# ----------------------------------------------------------------------------
# Host-side (plain JAX) glue: exact PyTorch linear / align_corners=False interp
# ----------------------------------------------------------------------------
def _interp_pos_embed(pos_embed: jnp.ndarray, N: int) -> jnp.ndarray:
    """pos_embed: (1, C, L) -> interpolated (C, N), float32.

    Matches F.interpolate(mode='linear', align_corners=False), including the
    left-edge clamp and the right-edge i0 == i1 case.
    """
    _, C, L = pos_embed.shape
    pe = pos_embed[0].astype(jnp.float32)                    # (C, L)
    j = jnp.arange(N, dtype=jnp.float32)
    src = (j + 0.5) * (L / N) - 0.5
    src = jnp.maximum(src, 0.0)                              # PyTorch left-edge clamp
    i0 = jnp.minimum(jnp.floor(src).astype(jnp.int32), L - 1)
    i1 = jnp.minimum(i0 + 1, L - 1)
    w1 = src - i0.astype(jnp.float32)
    w0 = 1.0 - w1
    g0 = jnp.take(pe, i0, axis=1)                            # (C, N)
    g1 = jnp.take(pe, i1, axis=1)                            # (C, N)
    return g0 * w0[None, :] + g1 * w1[None, :]


# ----------------------------------------------------------------------------
# Tile selection: lane-dense, dtype-aware, VMEM-budget-capped, exact division.
# ----------------------------------------------------------------------------
_LANE = 128
_DEFAULT_TILE_BUDGET = 8 * 1024 * 1024      # bytes per (tb, tn) x/out tile


def _pick_tiles(B: int, CN: int, itemsize: int, budget: int):
    # dtype-aware sublane granule: 8 rows f32, 16 bf16, 32 int8/fp8
    sub = 8 * max(1, 4 // itemsize)

    # ---- lane (last-dim) tile: largest multiple-of-128 divisor of CN whose
    # ---- sub-row tile fits the budget; else the full dim (block == array dim)
    if CN % _LANE == 0:
        m = CN // _LANE
        best = 1
        for d in range(1, m + 1):
            if m % d == 0 and d * _LANE * itemsize * sub <= budget:
                best = d
        tn = best * _LANE
    else:
        tn = CN

    # ---- batch (sublane) tile: dtype-aware multiple of 8 dividing B, budget-capped;
    # ---- else the full dim (block == array dim)
    def grow(granule):
        tb = granule
        while tb * 2 <= B and B % (tb * 2) == 0 and (tb * 2) * tn * itemsize <= budget:
            tb *= 2
        return tb

    if B % sub == 0:
        tb = grow(sub)
    elif B % 8 == 0:
        tb = grow(8)
    else:
        tb = B

    # ---- v7x has 2 TensorCores: for non-trivial arrays keep >=2 grid blocks
    # ---- so the parallel grid can be sharded across both cores.
    if CN // tn == 1 and B // tb == 1 and B * CN * itemsize >= (1 << 20):
        if B % 16 == 0:
            tb = B // 2                                  # still a multiple of 8
        elif CN % _LANE == 0 and CN // _LANE >= 2:
            m = CN // _LANE
            for d in range(m // 2, 0, -1):
                if m % d == 0:
                    tn = d * _LANE
                    break
    return tb, tn


# ----------------------------------------------------------------------------
# Pallas kernel: pure broadcast add (mem-bound streaming op), f32 accumulation
# ----------------------------------------------------------------------------
def _broadcast_add_kernel(x_ref, pe_ref, o_ref):
    # x_ref : (tb, tn) tile of the flattened input (x.dtype)
    # pe_ref: (1, tn)  f32 slice of the interpolated pos-embed; its block index
    #         is constant along the inner (batch) grid axis -> VMEM-resident.
    x = x_ref[...].astype(jnp.float32)
    o_ref[...] = (x + pe_ref[...]).astype(o_ref.dtype)       # VPU broadcast add


def squeeze_axial_positional_embedding(x: jnp.ndarray,
                                       pos_embed: jnp.ndarray,
                                       *,
                                       tile_budget_bytes: int = _DEFAULT_TILE_BUDGET
                                       ) -> jnp.ndarray:
    """x: (B, C, N); pos_embed: (1, C, L). Returns (B, C, N) in x.dtype."""
    B, C, N = x.shape
    _, C2, L = pos_embed.shape
    assert C == C2, "channel mismatch between x and pos_embed"

    # Hoisted, grid-invariant interpolation (tiny); kept in f32 so the add
    # inside the kernel is single-rounded even for bf16 x.
    interp = _interp_pos_embed(pos_embed, N)                 # (C, N) f32

    CN = C * N
    x_flat = x.reshape(B, CN)                                # lane-dense view
    pe_flat = interp.reshape(1, CN)

    itemsize = jnp.dtype(x.dtype).itemsize
    tb, tn = _pick_tiles(B, CN, itemsize, tile_budget_bytes)
    n_lane, n_batch = CN // tn, B // tb                      # exact by construction

    # double-buffered x + double-buffered out + double-buffered pe row
    peak_vmem = 4 * tb * tn * itemsize + 2 * tn * 4
    vmem_limit = max(48 << 20, int(peak_vmem * 1.25) + (1 << 20))

    out_flat = pl.pallas_call(
        _broadcast_add_kernel,
        out_shape=jax.ShapeDtypeStruct((B, CN), x.dtype),
        grid_spec=pltpu.PrefetchScalarGridSpec(
            num_scalar_prefetch=0,
            # Batch axis innermost: pe's block index (0, j) is constant across
            # consecutive grid steps, so its DMA is skipped.
            grid=(n_lane, n_batch),
            in_specs=[
                pl.BlockSpec((tb, tn), lambda j, i: (i, j)),  # x tile
                pl.BlockSpec((1, tn), lambda j, i: (0, j)),   # pos-embed row
            ],
            out_specs=pl.BlockSpec((tb, tn), lambda j, i: (i, j)),
        ),
        input_output_aliases={0: 0},                          # x aliases output
        compiler_params=pltpu.CompilerParams(
            dimension_semantics=("parallel", "parallel"),
            vmem_limit_bytes=vmem_limit,
        ),
    )(x_flat, pe_flat)

    return out_flat.reshape(B, C, N)


# ----------------------------------------------------------------------------
# Pure-JAX reference (independent one-hot-matrix formulation)
# ----------------------------------------------------------------------------
def _reference(x, pos_embed):
    B, C, N = x.shape
    L = pos_embed.shape[-1]
    j = jnp.arange(N, dtype=jnp.float32)
    src = jnp.maximum((j + 0.5) * (L / N) - 0.5, 0.0)
    i0 = jnp.minimum(jnp.floor(src).astype(jnp.int32), L - 1)
    i1 = jnp.minimum(i0 + 1, L - 1)
    w1 = src - i0.astype(jnp.float32)
    w0 = 1.0 - w1
    W = (jax.nn.one_hot(i0, L, dtype=jnp.float32).T * w0[None, :]
         + jax.nn.one_hot(i1, L, dtype=jnp.float32).T * w1[None, :])     # (L, N)
    interp = jnp.einsum("cl,ln->cn", pos_embed[0].astype(jnp.float32), W)
    return (x.astype(jnp.float32) + interp[None]).astype(x.dtype)


if __name__ == "__main__":
    key = jax.random.PRNGKey(0)
    k1, k2, k3, k4, k5, k6 = jax.random.split(key, 6)

    # Config A: C*N multiple of 128 (lane-dense tiled path), f32.
    B_a, C_a, L_a, N_a = 16, 16, 16, 32          # C*N = 512
    pos_a = jax.random.normal(k1, (1, C_a, L_a), dtype=jnp.float32)
    x_a = jax.random.normal(k2, (B_a, C_a, N_a), dtype=jnp.float32)
    out_a = jax.block_until_ready(squeeze_axial_positional_embedding(x_a, pos_a))
    ref_a = _reference(x_a, pos_a)
    assert out_a.shape == (B_a, C_a, N_a)
    assert jnp.allclose(out_a, ref_a, atol=1e-5, rtol=1e-5)

    # Config B: C*N NOT a multiple of 128, B not a multiple of 8
    # (full-dim fallback path for both block dims).
    B_b, C_b, L_b, N_b = 2, 8, 16, 24            # C*N = 192
    pos_b = jax.random.normal(k3, (1, C_b, L_b), dtype=jnp.float32)
    x_b = jax.random.normal(k4, (B_b, C_b, N_b), dtype=jnp.float32)
    out_b = jax.block_until_ready(squeeze_axial_positional_embedding(x_b, pos_b))
    ref_b = _reference(x_b, pos_b)
    assert out_b.shape == (B_b, C_b, N_b)
    assert jnp.allclose(out_b, ref_b, atol=1e-5, rtol=1e-5)

    # Config C: bf16 input with a small tile budget, forcing a (2, 2) grid so
    # the batch-innermost / VMEM-resident-pe index maps and the dtype-aware
    # (16-row) sublane tiling are exercised.
    B_c, C_c, L_c, N_c = 32, 32, 16, 64          # C*N = 2048
    pos_c = jax.random.normal(k5, (1, C_c, L_c), dtype=jnp.float32)
    x_c = jax.random.normal(k6, (B_c, C_c, N_c), dtype=jnp.bfloat16)
    out_c = jax.block_until_ready(
        squeeze_axial_positional_embedding(x_c, pos_c, tile_budget_bytes=32 * 1024))
    ref_c = _reference(x_c, pos_c)
    assert out_c.shape == (B_c, C_c, N_c)
    assert jnp.allclose(out_c.astype(jnp.float32), ref_c.astype(jnp.float32),
                        atol=2e-2, rtol=2e-2)

    print("KERNEL_OK")
</pallas_src>

<mosaic_0001>
module attributes {stable_mosaic.version = 11 : i64} {
  func.func @_broadcast_add_kernel(%arg0: i32, %arg1: i32, %arg2: memref<16x512xf32, #tpu.memory_space<vmem>>, %arg3: memref<1x512xf32, #tpu.memory_space<vmem>>, %arg4: memref<16x512xf32, #tpu.memory_space<vmem>>) attributes {dimension_semantics = [#tpu.dimension_semantics<parallel>, #tpu.dimension_semantics<parallel>], iteration_bounds = array<i64: 1, 1>, scalar_prefetch = 0 : i64, scratch_operands = 0 : i64, tpu.core_type = #tpu.core_type<tc>, window_params = [{transform_indices = @transform_0, window_bounds = array<i64: 16, 512>}, {transform_indices = @transform_1, window_bounds = array<i64: 1, 512>}, {transform_indices = @transform_2, window_bounds = array<i64: 16, 512>}]} {
    %c0 = arith.constant 0 : index
    %c0_0 = arith.constant 0 : index
    %0 = vector.load %arg2[%c0, %c0_0] : memref<16x512xf32, #tpu.memory_space<vmem>>, vector<16x512xf32>
    %c0_1 = arith.constant 0 : index
    %c0_2 = arith.constant 0 : index
    %1 = vector.load %arg3[%c0_1, %c0_2] : memref<1x512xf32, #tpu.memory_space<vmem>>, vector<1x512xf32>
    %2 = vector.broadcast %1 : vector<1x512xf32> to vector<16x512xf32>
    %3 = arith.addf %0, %2 : vector<16x512xf32>
    %c0_3 = arith.constant 0 : index
    %c0_4 = arith.constant 0 : index
    %4 = vector.load %arg4[%c0_3, %c0_4] : memref<16x512xf32, #tpu.memory_space<vmem>>, vector<16x512xf32>
    tpu.vector_store %arg4[%c0_3, %c0_4], %3 {strides = array<i32>} : memref<16x512xf32, #tpu.memory_space<vmem>>, vector<16x512xf32>,
    return
  }
  func.func @transform_0(%arg0: i32, %arg1: i32) -> (i32, i32) {
    %c0_i32 = arith.constant 0 : i32
    return %arg1, %arg0 : i32, i32
  }
  func.func @transform_1(%arg0: i32, %arg1: i32) -> (i32, i32) {
    %c0_i32 = arith.constant 0 : i32
    %c0_i32_0 = arith.constant 0 : i32
    return %c0_i32, %arg0 : i32, i32
  }
  func.func @transform_2(%arg0: i32, %arg1: i32) -> (i32, i32) {
    %c0_i32 = arith.constant 0 : i32
    return %arg1, %arg0 : i32, i32
  }
}

</mosaic_0001>

<llo_original>
// kernel: tpu_custom_call.1
$region0: #{tpu_custom_call.1}
  #allocation0 [shape = 'u32[]', space=smem, size = 0x4, offset = 0x4, fixed_abs, tag = 'smem constant byte address 0x4 - core index']
  #allocation1 [shape = 'u32[144,128]{1,0:T(1,128)}', space=vmem, size = 0x12000, scoped, tag = 'internal scratch']
  %s0 = inlined_call_operand.hbm [shape: f32[16,512], index: 0, kind: input, shape index: {}, may-alias: {0,2}]
  %s1 = inlined_call_operand.vmem [shape: f32[1,512], index: 1, kind: input, shape index: {}]
  %s2 = inlined_call_operand.hbm [shape: f32[16,512], index: 2, kind: output, shape index: {}, may-alias: {0,2}]
  %s3 = sld [smem:[#allocation0]]
  $region22: #{tpu_custom_call.1} parent=0
    _
  %s5 = ssub.s32 1, %s3
  %s6 = scalar_select 0, %s5, %s3
  $region1: #{tpu_custom_call.1} parent=0
    #allocation2 [shape = 'u8[32768]{0}', space=vmem, size = 0x8000, scoped, tag = 'input window, operand 0, single buffered']
    #allocation3 [shape = 's32[1]{0}', space=sflag, size = 0x4, scoped, tag = 'scoped memory for tpu_custom_call.1']
    #allocation4 [shape = 's32[1]{0}', space=sflag, size = 0x4, scoped, tag = 'scoped memory for tpu_custom_call.1']
    #allocation5 [shape = 'u8[32768]{0}', space=vmem, size = 0x8000, scoped, tag = 'output window, operand 0, single buffered']
    %7 = vsyncpa [#allocation3], 0
    %8 = vsyncpa [#allocation4], 0
    // Predicated region
    $region2: #{tpu_custom_call.1} parent=1 // pred_check
      _
    $region3: #{tpu_custom_call.1} parent=1 // pred_check_branch
      %10 = sbr.rel (0) target = $region5
    $region4: #{tpu_custom_call.1} parent=1 // pred_region
      %s12 = ssub.s32 1024, 1024
      %13 = vsyncadd [#allocation3], %s12
      %s14 = sshll.u32 [#allocation2], 4
      %s15 = int_to_ptr.vmem [resolvable:$true] %s14
      %20 = dma.hbm_to_vmem [thread:$0]  %s0, 1024, %s15, [#allocation3], 512, 512, 32
    $region5: #{tpu_custom_call.1} parent=1 // pred_fallthru
      _
    // Predicated region
    $region6: #{tpu_custom_call.1} parent=1 // pred_check
      _
    $region7: #{tpu_custom_call.1} parent=1 // pred_check_branch
      %22 = sbr.rel (0) target = $region9
    $region8: #{tpu_custom_call.1} parent=1 // pred_region
      _
    $region9: #{tpu_custom_call.1} parent=1 // pred_fallthru
      _
    // Predicated region
    $region10: #{tpu_custom_call.1} parent=1 // pred_check
      _
    $region11: #{tpu_custom_call.1} parent=1 // pred_check_branch
      %24 = sbr.rel (0) target = $region13
    $region12: #{tpu_custom_call.1} parent=1 // pred_region
      %25 = dma.done [#allocation3], 1024
    $region13: #{tpu_custom_call.1} parent=1 // pred_fallthru
      _
    %v26 = vld [vmem:[#allocation2] sm:$0xff]
    %v27 = vld [vmem:[#allocation2 + $0x8] sm:$0xff]
    %v28 = vld [vmem:[#allocation2 + $0x10] sm:$0xff]
    %v29 = vld [vmem:[#allocation2 + $0x18] sm:$0xff]
    %v30 = vld [vmem:[#allocation2 + $0x20] sm:$0xff]
    %v31 = vld [vmem:[#allocation2 + $0x28] sm:$0xff]
    %v32 = vld [vmem:[#allocation2 + $0x30] sm:$0xff]
    %v33 = vld [vmem:[#allocation2 + $0x38] sm:$0xff]
    %v34 = vld [vmem:[%s1] sm:$0xf]
    %v36 = vlaneseq
    %v37 = vshrl.u32 %v36, 7
    %v38 = vsub.s32 0, %v37
    %v39 = vrot.slane %v34, %v38
    %v40 = vlaneseq
    %v41 = vshrl.u32 %v40, 7
    %v42 = vsub.s32 1, %v41
    %v43 = vrot.slane %v34, %v42
    %v44 = vlaneseq
    %v45 = vshrl.u32 %v44, 7
    %v46 = vsub.s32 2, %v45
    %v47 = vrot.slane %v34, %v46
    %v48 = vlaneseq
    %v49 = vshrl.u32 %v48, 7
    %v50 = vsub.s32 3, %v49
    %v51 = vrot.slane %v34, %v50
    %v56 = vadd.f32 %v26, %v39
    %v57 = vadd.f32 %v27, %v43
    %v58 = vadd.f32 %v28, %v47
    %v59 = vadd.f32 %v29, %v51
    %v60 = vadd.f32 %v30, %v39
    %v61 = vadd.f32 %v31, %v43
    %v62 = vadd.f32 %v32, %v47
    %v63 = vadd.f32 %v33, %v51
    %64 = vst [vmem:[#allocation5] sm:$0xff] %v56
    %65 = vst [vmem:[#allocation5 + $0x8] sm:$0xff] %v57
    %66 = vst [vmem:[#allocation5 + $0x10] sm:$0xff] %v58
    %67 = vst [vmem:[#allocation5 + $0x18] sm:$0xff] %v59
    %68 = vst [vmem:[#allocation5 + $0x20] sm:$0xff] %v60
    %69 = vst [vmem:[#allocation5 + $0x28] sm:$0xff] %v61
    %70 = vst [vmem:[#allocation5 + $0x30] sm:$0xff] %v62
    %71 = vst [vmem:[#allocation5 + $0x38] sm:$0xff] %v63
    // Predicated region
    $region14: #{tpu_custom_call.1} parent=1 // pred_check
      _
    $region15: #{tpu_custom_call.1} parent=1 // pred_check_branch
      %73 = sbr.rel (0) target = $region17
    $region16: #{tpu_custom_call.1} parent=1 // pred_region
      %s75 = ssub.s32 1024, 1024
      %76 = vsyncadd [#allocation4], %s75
      %s77 = sshll.u32 [#allocation5], 4
      %s78 = int_to_ptr.vmem [resolvable:$true] %s77
      %83 = dma.vmem_to_hbm [thread:$0]  %s78, 1024, %s2, [#allocation4], 512, 512, 32
    $region17: #{tpu_custom_call.1} parent=1 // pred_fallthru
      _
    // Predicated region
    $region18: #{tpu_custom_call.1} parent=1 // pred_check
      _
    $region19: #{tpu_custom_call.1} parent=1 // pred_check_branch
      %85 = sbr.rel (0) target = $region21
    $region20: #{tpu_custom_call.1} parent=1 // pred_region
      %86 = dma.done [#allocation4], 1024
    $region21: #{tpu_custom_call.1} parent=1 // pred_fallthru
      _
    %87 = vsyncpa [#allocation3], 1
    %88 = vsyncpa [#allocation4], 1

</llo_original>
